<compile_context>
chip_gen: v5e
topology: v5e:2x2
jax: 0.10.0
libtpu: 0.0.40
codegen_flags: <defaults>
</compile_context>

<pallas_src>
import jax
import jax.numpy as jnp
from jax.experimental import pallas as pl
from jax.experimental.pallas import tpu as pltpu


_SUBLANE_BF16 = 16          # bf16 sublane packing (second-to-last dim)

# Tile caps.
_TM_CAP = 512               # rows per output tile (multiple of 16)
_TN_CAP = 512               # lane-dense output width (multiple of 128)
_K_COLLAPSE = 4096          # collapse contraction into one step up to this K
_TK = 2048                  # K tile for the huge-K fallback path

# Explicit scoped-VMEM budget (bytes).  Worst-case per-step footprint with the
# caps above is ~18 MiB (double-buffered bf16 x/W tiles + f32 output tile), so
# 40 MiB leaves pipeline headroom on every generation: well above v5e's 16 MiB
# *default* scoped limit (128 MiB physical), comfortable on v6e, and inside
# the ~40-48 MiB safe range for v7x's 64 MiB physical VMEM.
_VMEM_LIMIT_BYTES = 40 * 1024 * 1024


def _round_up(x, m):
    return ((x + m - 1) // m) * m


def _num_tensorcores():
    # v7x has 2 TensorCores per chip; v5e/v6e have 1.  Used only for the
    # megacore load-balance heuristic; defaults to 1 on any failure.
    try:
        kind = jax.devices()[0].device_kind.lower()
    except Exception:
        return 1
    return 2 if "7" in kind else 1


def _choose_tiles(M, N):
    # Full-dim blocks when the array fits under the cap (always layout-legal,
    # no padding needed); otherwise the cap with a cdiv grid.
    tm = M if M <= _TM_CAP else _TM_CAP
    tn = N if N <= _TN_CAP else _TN_CAP
    grid_m = pl.cdiv(M, tm)
    grid_n = pl.cdiv(N, tn)
    # v7x megacore balance: a parallel extent of 1 x 1 leaves one TensorCore
    # idle on 2-TC chips; split the M axis when there is enough work.
    if _num_tensorcores() > 1 and grid_m * grid_n == 1 and M >= 2 * _SUBLANE_BF16:
        tm = _round_up(pl.cdiv(M, 2), _SUBLANE_BF16)
        grid_m = pl.cdiv(M, tm)
    return tm, tn, grid_m, grid_n


def _linear_kernel(x_ref, w_ref, b_ref, o_ref):
    # Single-step contraction: x (tm, K) @ w (K, tn) on the MXU (f32 result),
    # bias add fused into the store.  No accumulator scratch, no per-k RMW.
    acc = jnp.dot(x_ref[...], w_ref[...], preferred_element_type=jnp.float32)
    o_ref[...] = (acc + b_ref[...]).astype(o_ref.dtype)


def _linear_kernel_kacc(x_ref, w_ref, b_ref, o_ref, acc_ref):
    # Huge-K fallback: f32 accumulator resident across the trailing K axis.
    # Initialised with the broadcast bias at k == 0; plain full-tile `+=`.
    k = pl.program_id(2)

    @pl.when(k == 0)
    def _():
        acc_ref[...] = jnp.broadcast_to(b_ref[...], acc_ref.shape)

    acc_ref[...] += jnp.dot(x_ref[...], w_ref[...],
                            preferred_element_type=jnp.float32)

    @pl.when(k == pl.num_programs(2) - 1)
    def _():
        o_ref[...] = acc_ref[...].astype(o_ref.dtype)


def _linear_pallas(x2d, weight, bias, *, compute_dtype=jnp.bfloat16):
    """y = x2d @ weight.T + bias with a tiled Pallas TPU kernel.

    x2d    : (M, K)
    weight : (N, K)  -- native PyTorch Linear layout (out_features, in_features)
    bias   : (N,)
    """
    M, K = x2d.shape
    N = weight.shape[0]
    out_dtype = x2d.dtype

    # bf16 operands feed the MXU at its native rate and halve HBM traffic for
    # the two big streams; accumulation stays in f32 (standard mixed precision
    # for Linear layers).
    x_c = x2d.astype(compute_dtype)
    # One-time (out,in) -> (in,out) transpose fused with the cast; the kernel
    # then runs a plain row-major (tm,K)@(K,tn) contraction with no per-tile
    # transpose, and the N*K copy is amortised over every M tile.
    w_c = weight.T.astype(compute_dtype)           # (K, N)
    b_c = bias.astype(jnp.float32).reshape(1, N)   # (1, N), kept f32

    tm, tn, grid_m, grid_n = _choose_tiles(M, N)

    isz_in = jnp.dtype(compute_dtype).itemsize
    isz_out = jnp.dtype(out_dtype).itemsize
    cost = pl.CostEstimate(
        flops=2 * M * K * N,
        transcendentals=0,
        bytes_accessed=isz_in * (M * K + K * N) + 4 * N + isz_out * M * N,
    )

    if K <= _K_COLLAPSE:
        # Common case: collapse the contraction into one step.  Grid order is
        # (N tiles outer, M tiles inner) so the weight tile is DMA'd exactly
        # once per N tile and stays resident across the inner M sweep; x is
        # streamed once per N tile (once total for the usual N <= 512 case).
        # No operand padding anywhere: full-K blocks + cdiv grids handle
        # non-multiple M / N (edge output rows/cols are dropped on writeback).
        return pl.pallas_call(
            _linear_kernel,
            out_shape=jax.ShapeDtypeStruct((M, N), out_dtype),
            grid_spec=pltpu.PrefetchScalarGridSpec(
                num_scalar_prefetch=0,
                grid=(grid_n, grid_m),
                in_specs=[
                    pl.BlockSpec((tm, K), lambda j, i: (i, 0)),
                    pl.BlockSpec((K, tn), lambda j, i: (0, j)),
                    pl.BlockSpec((1, tn), lambda j, i: (0, j)),
                ],
                out_specs=pl.BlockSpec((tm, tn), lambda j, i: (i, j)),
            ),
            compiler_params=pltpu.CompilerParams(
                dimension_semantics=("parallel", "parallel"),
                vmem_limit_bytes=_VMEM_LIMIT_BYTES),
            cost_estimate=cost,
        )(x_c, w_c, b_c)

    # Huge in_features: tile K as the trailing accumulator axis.  Only the
    # contraction axis needs explicit zero padding for correctness (zeros add
    # nothing to the dot); M / N remain unpadded.
    K_pad = _round_up(K, _TK)
    if K_pad != K:
        x_c = jnp.pad(x_c, ((0, 0), (0, K_pad - K)))
        w_c = jnp.pad(w_c, ((0, K_pad - K), (0, 0)))

    return pl.pallas_call(
        _linear_kernel_kacc,
        out_shape=jax.ShapeDtypeStruct((M, N), out_dtype),
        grid_spec=pltpu.PrefetchScalarGridSpec(
            num_scalar_prefetch=0,
            grid=(grid_m, grid_n, K_pad // _TK),
            in_specs=[
                pl.BlockSpec((tm, _TK), lambda i, j, k: (i, k)),
                pl.BlockSpec((_TK, tn), lambda i, j, k: (k, j)),
                pl.BlockSpec((1, tn), lambda i, j, k: (0, j)),
            ],
            out_specs=pl.BlockSpec((tm, tn), lambda i, j, k: (i, j)),
            scratch_shapes=[pltpu.VMEM((tm, tn), jnp.float32)],
        ),
        compiler_params=pltpu.CompilerParams(
            dimension_semantics=("parallel", "parallel", "arbitrary"),
            vmem_limit_bytes=_VMEM_LIMIT_BYTES),
        cost_estimate=cost,
    )(x_c, w_c, b_c)


def time_distributed_linear(x, weight, bias):
    """
    Mirrors TimeDistributed(nn.Linear(in_f, out_f)).forward(x).

    x      : (bs, seq_len, ..., in_features) or rank <= 2
    weight : (out_features, in_features)   -- PyTorch Linear layout
    bias   : (out_features,)
    """
    if x.ndim <= 2:
        # TimeDistributed passes rank<=2 inputs straight to the wrapped Linear.
        x2d = x if x.ndim == 2 else x.reshape(1, -1)
        y = _linear_pallas(x2d, weight, bias)
        return y if x.ndim == 2 else y.reshape(-1)

    lead = x.shape[:-1]                        # (bs, seq_len, ...) leading dims
    x2d = x.reshape(-1, x.shape[-1])           # (bs*seq*..., in_features)
    y2d = _linear_pallas(x2d, weight, bias)    # (bs*seq*..., out_features)
    return y2d.reshape(*lead, y2d.shape[-1])


if __name__ == "__main__":
    bs, seq_len = 2, 8
    in_features, out_features = 32, 32

    key = jax.random.PRNGKey(0)
    kx, kw, kb = jax.random.split(key, 3)

    x = jax.random.normal(kx, (bs, seq_len, in_features), dtype=jnp.float32)
    # Deterministic "PyTorch-like" Linear params (uniform in +-1/sqrt(in_f)).
    bound = 1.0 / jnp.sqrt(jnp.float32(in_features))
    weight = jax.random.uniform(
        kw, (out_features, in_features), minval=-bound, maxval=bound,
        dtype=jnp.float32)
    bias = jax.random.uniform(
        kb, (out_features,), minval=-bound, maxval=bound, dtype=jnp.float32)

    fwd = jax.jit(time_distributed_linear)
    y = fwd(x, weight, bias)
    y = jax.block_until_ready(y)

    # Reference check (plain JAX) of the TimeDistributed-Linear semantics.
    # bf16 MXU operands with f32 accumulation -> mixed-precision tolerance.
    y_ref = (x.reshape(bs * seq_len, in_features) @ weight.T + bias).reshape(
        bs, seq_len, out_features)
    assert y.shape == (bs, seq_len, out_features)
    assert jnp.allclose(y, y_ref, atol=2e-2, rtol=2e-2), float(
        jnp.max(jnp.abs(y - y_ref)))

    print("KERNEL_OK")
</pallas_src>

<mosaic_0001>
module attributes {stable_mosaic.version = 11 : i64} {
  func.func @_linear_kernel(%arg0: i32, %arg1: i32, %arg2: memref<16x32xbf16, #tpu.memory_space<vmem>>, %arg3: memref<32x32xbf16, #tpu.memory_space<vmem>>, %arg4: memref<1x32xf32, #tpu.memory_space<vmem>>, %arg5: memref<16x32xf32, #tpu.memory_space<vmem>>) attributes {dimension_semantics = [#tpu.dimension_semantics<parallel>, #tpu.dimension_semantics<parallel>], iteration_bounds = array<i64: 1, 1>, scalar_prefetch = 0 : i64, scratch_operands = 0 : i64, tpu.core_type = #tpu.core_type<tc>, window_params = [{transform_indices = @transform_0, window_bounds = array<i64: 16, 32>}, {transform_indices = @transform_1, window_bounds = array<i64: 32, 32>}, {transform_indices = @transform_2, window_bounds = array<i64: 1, 32>}, {transform_indices = @transform_3, window_bounds = array<i64: 16, 32>}]} {
    %c0 = arith.constant 0 : index
    %c0_0 = arith.constant 0 : index
    %0 = vector.load %arg2[%c0, %c0_0] : memref<16x32xbf16, #tpu.memory_space<vmem>>, vector<16x32xbf16>
    %c0_1 = arith.constant 0 : index
    %c0_2 = arith.constant 0 : index
    %1 = vector.load %arg3[%c0_1, %c0_2] : memref<32x32xbf16, #tpu.memory_space<vmem>>, vector<32x32xbf16>
    %cst = arith.constant dense<0.000000e+00> : vector<16x32xf32>
    %2 = tpu.matmul %0, %1, %cst {dimension_numbers = #tpu.dot_dimension_numbers<[1], [0], [0], [1], [0, 0, 1, 1], [], []>} : vector<16x32xbf16>, vector<32x32xbf16>, vector<16x32xf32> -> vector<16x32xf32>
    %c0_3 = arith.constant 0 : index
    %c0_4 = arith.constant 0 : index
    %3 = vector.load %arg4[%c0_3, %c0_4] : memref<1x32xf32, #tpu.memory_space<vmem>>, vector<1x32xf32>
    %4 = vector.broadcast %3 : vector<1x32xf32> to vector<16x32xf32>
    %5 = arith.addf %2, %4 : vector<16x32xf32>
    %c0_5 = arith.constant 0 : index
    %c0_6 = arith.constant 0 : index
    %6 = vector.load %arg5[%c0_5, %c0_6] : memref<16x32xf32, #tpu.memory_space<vmem>>, vector<16x32xf32>
    tpu.vector_store %arg5[%c0_5, %c0_6], %5 {strides = array<i32>} : memref<16x32xf32, #tpu.memory_space<vmem>>, vector<16x32xf32>,
    return
  }
  func.func @transform_0(%arg0: i32, %arg1: i32) -> (i32, i32) {
    %c0_i32 = arith.constant 0 : i32
    %c0_i32_0 = arith.constant 0 : i32
    return %arg1, %c0_i32 : i32, i32
  }
  func.func @transform_1(%arg0: i32, %arg1: i32) -> (i32, i32) {
    %c0_i32 = arith.constant 0 : i32
    %c0_i32_0 = arith.constant 0 : i32
    return %c0_i32, %arg0 : i32, i32
  }
  func.func @transform_2(%arg0: i32, %arg1: i32) -> (i32, i32) {
    %c0_i32 = arith.constant 0 : i32
    %c0_i32_0 = arith.constant 0 : i32
    return %c0_i32, %arg0 : i32, i32
  }
  func.func @transform_3(%arg0: i32, %arg1: i32) -> (i32, i32) {
    %c0_i32 = arith.constant 0 : i32
    return %arg1, %arg0 : i32, i32
  }
}

</mosaic_0001>

<llo_original>
// kernel: time_distributed_linear.1
$region0: #{time_distributed_linear.1}
  #allocation0 [shape = 'u32[]', space=smem, size = 0x4, offset = 0x4, fixed_abs, tag = 'smem constant byte address 0x4 - core index']
  #allocation1 [shape = 'u32[72,128]{1,0:T(1,128)}', space=vmem, size = 0x9000, scoped, tag = 'internal scratch']
  %s0 = inlined_call_operand.vmem [shape: bf16[16,32], index: 0, kind: input, shape index: {}]
  %s1 = inlined_call_operand.vmem [shape: bf16[32,32], index: 1, kind: input, shape index: {}]
  %s2 = inlined_call_operand.vmem [shape: f32[1,32], index: 2, kind: input, shape index: {}]
  %s3 = inlined_call_operand.hbm [shape: f32[16,32], index: 3, kind: output, shape index: {}]
  %s4 = sld [smem:[#allocation0]]
  $region22: #{time_distributed_linear.1} parent=0
    _
  %s6 = ssub.s32 1, %s4
  %s7 = scalar_select 0, %s6, %s4
  $region1: #{time_distributed_linear.1} parent=0
    #allocation2 [shape = 'u8[8192]{0}', space=vmem, size = 0x2000, scoped, tag = 'output window, operand 0, single buffered']
    #allocation3 [shape = 's32[1]{0}', space=sflag, size = 0x4, scoped, tag = 'scoped memory for time_distributed_linear.1']
    %8 = vsyncpa [#allocation3], 0
    // Predicated region
    $region2: #{time_distributed_linear.1} parent=1 // pred_check
      _
    $region3: #{time_distributed_linear.1} parent=1 // pred_check_branch
      %10 = sbr.rel (0) target = $region5
    $region4: #{time_distributed_linear.1} parent=1 // pred_region
      _
    $region5: #{time_distributed_linear.1} parent=1 // pred_fallthru
      _
    // Predicated region
    $region6: #{time_distributed_linear.1} parent=1 // pred_check
      _
    $region7: #{time_distributed_linear.1} parent=1 // pred_check_branch
      %12 = sbr.rel (0) target = $region9
    $region8: #{time_distributed_linear.1} parent=1 // pred_region
      _
    $region9: #{time_distributed_linear.1} parent=1 // pred_fallthru
      _
    // Predicated region
    $region10: #{time_distributed_linear.1} parent=1 // pred_check
      _
    $region11: #{time_distributed_linear.1} parent=1 // pred_check_branch
      %14 = sbr.rel (0) target = $region13
    $region12: #{time_distributed_linear.1} parent=1 // pred_region
      _
    $region13: #{time_distributed_linear.1} parent=1 // pred_fallthru
      _
    %v16 = vld [vmem:[%s0] sm:$0xf]
    %v17 = vld [vmem:[%s0 + $0x4] sm:$0xf]
    %v18 = vld [vmem:[%s1] sm:$0xf]
    %v19 = vld [vmem:[%s1 + $0x4] sm:$0xf]
    %v20 = vld [vmem:[%s1 + $0x8] sm:$0xf]
    %v21 = vld [vmem:[%s1 + $0xc] sm:$0xf]
    %v22 = vld [vmem:[%s2] sm:$0x1]
    %v24 = vperm.slane %v22, 0
    %v28 = vunpack.c.l.b16 %v16
    %v29 = vunpack.c.l.b16 %v17
    %v30 = vpack.c.b16 %v29, %v28
    %v35 = vunpack.c.l.b16 %v18
    %v36 = vunpack.c.l.b16 %v19
    %v37 = vunpack.c.l.b16 %v20
    %v38 = vunpack.c.l.b16 %v21
    %v39 = vpack.c.b16 %v36, %v35
    %v40 = vpack.c.b16 %v38, %v37
    %vm43 = vcmask 261120
    %v45 = vsel %vm43, %v30, 0
    %47 = vmatpush.bf16.msra.mxu0 0
    %48 = vmatpush.bf16.msra.mxu0 0
    %49 = vmatpush.bf16.msra.mxu0 0
    %50 = vmatpush.bf16.msra.mxu0 0
    %51 = vmatpush.bf16.msra.mxu0 0
    %52 = vmatpush.bf16.msra.mxu0 0
    %53 = vmatpush.bf16.msra.mxu0 %v40
    %54 = vmatpush.bf16.msra.mxu0 %v39
    %55 = vmatmul.bf16.gmra.mxu0 %v45
    %v56 = vpop.f32.mrf.mxu0
    %v57 = vadd.f32 %v24, %v56
    %v58 = vpop.f32.mrf.mxu0
    %v59 = vadd.f32 %v24, %v58
    %60 = vdwg.mxu0
    %61 = vst.msk [vmem:[#allocation2] sm:$0xff] %vm43, %v57
    %62 = vst.msk [vmem:[#allocation2 + $0x8] sm:$0xff] %vm43, %v59
    // Predicated region
    $region14: #{time_distributed_linear.1} parent=1 // pred_check
      _
    $region15: #{time_distributed_linear.1} parent=1 // pred_check_branch
      %64 = sbr.rel (0) target = $region17
    $region16: #{time_distributed_linear.1} parent=1 // pred_region
      %66 = vsyncadd [#allocation3], 0
      %s67 = sshll.u32 [#allocation2], 4
      %s68 = int_to_ptr.vmem [resolvable:$true] %s67
      %s69 = sshll.u32 %s3, 4
      %s70 = int_to_ptr.hbm [resolvable:$true] %s69
      %75 = dma.vmem_to_hbm [thread:$0]  %s68, 256, %s70, [#allocation3], 128, 128, 8
    $region17: #{time_distributed_linear.1} parent=1 // pred_fallthru
      _
    // Predicated region
    $region18: #{time_distributed_linear.1} parent=1 // pred_check
      _
    $region19: #{time_distributed_linear.1} parent=1 // pred_check_branch
      %77 = sbr.rel (0) target = $region21
    $region20: #{time_distributed_linear.1} parent=1 // pred_region
      %79 = dma.done [#allocation3], 256
    $region21: #{time_distributed_linear.1} parent=1 // pred_fallthru
      _
    %80 = vsyncpa [#allocation3], 1

</llo_original>
